<compile_context>
chip_gen: v5e
topology: v5e:2x2
jax: 0.10.0
libtpu: 0.0.40
codegen_flags: <defaults>
</compile_context>

<pallas_src>
import functools
import math

import jax
import jax.numpy as jnp
import numpy as np
from jax.experimental import pallas as pl
from jax.experimental.pallas import tpu as pltpu

TAU = 1.25          # getSpikingNode()
V_THRESHOLD = 0.5   # getSpikingNode()
_LANE = 128
_SUBLANE = 8


def _adaptive_pool_matrix(in_size: int, out_size: int) -> np.ndarray:
    """P[i, h] = 1/len(window_i) for h in window_i (AdaptiveAvgPool2d semantics)."""
    P = np.zeros((out_size, in_size), dtype=np.float32)
    for i in range(out_size):
        start = (i * in_size) // out_size
        end = math.ceil((i + 1) * in_size / out_size)
        P[i, start:end] = 1.0 / float(end - start)
    return P


def _round_up(x: int, m: int) -> int:
    return ((x + m - 1) // m) * m


def _vmem_capacity_bytes() -> int:
    """Per-core VMEM capacity; falls back to the v7x size (safe everywhere)."""
    default = 64 * 1024 * 1024
    try:
        info = pltpu.get_tpu_info()
        cap = int(getattr(info, "vmem_capacity_bytes", 0) or 0)
        return cap if cap > 0 else default
    except Exception:
        return default


def _pick_tiles(T, NC_pad, HW_pad, OHW_pad, in_bytes, out_bytes, vmem_cap):
    """Choose (TNC, TB) against the real VMEM capacity (64 MiB v7x / 128 MiB v5e-v6e)."""
    budget = vmem_cap // 2  # ~32 MiB on v7x, ~64 MiB on v5e/v6e

    def block_bytes(tnc, tb):
        x_blk = 2 * tb * tnc * HW_pad * in_bytes                  # double-buffered input
        x_f32 = tb * tnc * HW_pad * 4 if in_bytes < 4 else 0      # in-kernel f32 upcast
        out_blk = 2 * tb * OHW_pad * tnc * out_bytes              # double-buffered output
        pooled = tb * tnc * OHW_pad * 4                           # fused matmul result (f32)
        v_state = OHW_pad * tnc * 4                               # membrane potential
        pmat = 2 * OHW_pad * HW_pad * 4                           # pooling matrix
        return x_blk + x_f32 + out_blk + pooled + v_state + pmat

    # TNC: largest lane-multiple divisor of NC_pad fitting the budget at TB=1;
    # keep >= 2 NC tiles whenever possible so megacore / v7x dual-TC both get work.
    divisors = [d for d in range(_LANE, NC_pad + 1, _LANE) if NC_pad % d == 0]
    tnc = _LANE
    for cand in sorted(divisors, reverse=True):
        if NC_pad >= 2 * _LANE and cand > NC_pad // 2:
            continue
        if block_bytes(cand, 1) <= budget:
            tnc = cand
            break

    # TB: as many timesteps per grid step as fit (no artificial cap of 8).
    tb = 1
    while tb < T and block_bytes(tnc, tb * 2) <= budget:
        tb *= 2
    while tb < T and block_bytes(tnc, tb + 1) <= budget:
        tb += 1
    tb = min(tb, T)
    # Prefer a divisor of T in [tb//2, tb] (no T padding); otherwise pad T in the wrapper.
    for c in range(tb, max(tb // 2, 1) - 1, -1):
        if T % c == 0:
            tb = c
            break

    return tnc, tb, block_bytes(tnc, tb)


def _lif_pool_kernel(x_ref, pt_ref, o_ref, v_ref, *, tb, tnc, decay, v_th):
    """One grid step = one NC tile x one block of TB timesteps (recurrent in T)."""
    # T is the innermost grid axis, so t_block == 0 marks the start of the time
    # loop for the current NC tile: reset the membrane potential.
    @pl.when(pl.program_id(1) == 0)
    def _():
        v_ref[...] = jnp.zeros_like(v_ref)

    hw = x_ref.shape[-1]
    # One fused MXU matmul for all TB timesteps of this block:
    #   (OHW, HW) . (TB*TNC, HW)^T -> (OHW, TB*TNC)   (lane-dense in TB*TNC)
    # The (tb, tnc, hw) -> (tb*tnc, hw) reshape is a leading-dim merge (layout-trivial).
    x_all = x_ref[...].astype(jnp.float32).reshape(tb * tnc, hw)
    pooled = jax.lax.dot_general(
        pt_ref[...], x_all,
        dimension_numbers=(((1,), (1,)), ((), ())),
        preferred_element_type=jnp.float32,
    )

    # Serial LIF recurrence: a few VPU ops per step on static 128-aligned lane slices.
    for i in range(tb):
        p_i = pooled[:, i * tnc:(i + 1) * tnc]
        # Charge (decay_input=False, v_reset=0): v <- v*(1 - 1/tau) + x
        v = v_ref[...] * decay + p_i
        fired = v >= v_th
        o_ref[i] = fired.astype(o_ref.dtype)       # heaviside spike
        v_ref[...] = jnp.where(fired, 0.0, v)      # hard reset


def spiking_adaptive_avg_pool2d(x, dimension, *, cast_to_bf16=False, interpret=False):
    """x: [T, N, C, H, W] float; returns [T, N, C, oh, ow] {0,1} spikes."""
    if isinstance(dimension, int):
        oh = ow = dimension
    else:
        oh, ow = dimension

    T, N, C, H, W = x.shape
    NC, HW, OHW = N * C, H * W, oh * ow

    out_dtype = x.dtype if x.dtype in (jnp.bfloat16, jnp.float32) else jnp.float32
    # Optional bf16 input path: halves the dominant HBM read on this
    # bandwidth-bound kernel. Pooling weights and LIF math stay in f32; spikes
    # landing exactly at the threshold may still flip vs an f32 reference.
    in_dtype = jnp.bfloat16 if cast_to_bf16 else out_dtype

    # (8, 128)-aligned padded sizes (unmasked loads/stores everywhere).
    NC_pad = max(_LANE, _round_up(NC, _LANE))
    HW_pad = _round_up(HW, _LANE)
    OHW_pad = _round_up(OHW, _SUBLANE)

    # Pooling matrix P^T in f32 (never quantized), zero-padded.
    Ph = _adaptive_pool_matrix(H, oh)   # (oh, H)
    Pw = _adaptive_pool_matrix(W, ow)   # (ow, W)
    pmat = np.zeros((OHW_pad, HW_pad), dtype=np.float32)
    pmat[:OHW, :HW] = np.einsum("ih,jw->ijhw", Ph, Pw).reshape(OHW, HW)
    pmat = jnp.asarray(pmat)

    # Lane-dense neuron axis. Padded neurons/rows see x=0 / P=0, so v stays 0
    # and they never fire; padding is sliced off below.
    x_flat = x.reshape(T, NC, HW).astype(in_dtype)
    if NC_pad != NC or HW_pad != HW:
        x_flat = jnp.pad(x_flat, ((0, 0), (0, NC_pad - NC), (0, HW_pad - HW)))

    in_bytes = np.dtype(in_dtype).itemsize
    out_bytes = np.dtype(out_dtype).itemsize
    vmem_cap = _vmem_capacity_bytes()
    TNC, TB, blk_bytes = _pick_tiles(T, NC_pad, HW_pad, OHW_pad,
                                     in_bytes, out_bytes, vmem_cap)

    T_pad = _round_up(T, TB)
    if T_pad != T:
        x_flat = jnp.pad(x_flat, ((0, T_pad - T), (0, 0), (0, 0)))

    # vmem limit derived from the chosen block + headroom, below physical capacity.
    vmem_limit = min(int(vmem_cap * 0.9),
                     max(32 * 1024 * 1024, int(blk_bytes * 1.5)))

    decay = 1.0 - 1.0 / TAU

    flops = 2 * T_pad * NC_pad * HW_pad * OHW_pad
    bytes_accessed = (T_pad * NC_pad * (HW_pad * in_bytes + OHW_pad * out_bytes)
                      + OHW_pad * HW_pad * 4)

    out = pl.pallas_call(
        functools.partial(_lif_pool_kernel, tb=TB, tnc=TNC,
                          decay=decay, v_th=V_THRESHOLD),
        out_shape=jax.ShapeDtypeStruct((T_pad, OHW_pad, NC_pad), out_dtype),
        grid_spec=pltpu.PrefetchScalarGridSpec(
            num_scalar_prefetch=0,
            grid=(NC_pad // TNC, T_pad // TB),      # (NC tiles, T blocks), T innermost
            in_specs=[
                pl.BlockSpec((TB, TNC, HW_pad), lambda nc, t: (t, nc, 0)),
                pl.BlockSpec((OHW_pad, HW_pad), lambda nc, t: (0, 0)),
            ],
            out_specs=pl.BlockSpec((TB, OHW_pad, TNC), lambda nc, t: (t, 0, nc)),
            scratch_shapes=[pltpu.VMEM((OHW_pad, TNC), jnp.float32)],  # membrane potential
        ),
        compiler_params=pltpu.CompilerParams(
            # NC tiles are independent (LIF state is per-neuron) -> parallel;
            # T carries the recurrence in scratch -> arbitrary.
            dimension_semantics=("parallel", "arbitrary"),
            vmem_limit_bytes=vmem_limit,
        ),
        cost_estimate=pl.CostEstimate(
            flops=flops, transcendentals=0, bytes_accessed=bytes_accessed),
        interpret=interpret,
    )(x_flat, pmat)

    out = out[:T, :OHW, :NC]                 # drop T / OHW / lane padding
    out = jnp.transpose(out, (0, 2, 1))      # small output-side transpose
    return out.reshape(T, N, C, oh, ow)

# TODO(synk): DSpike surrogate gradient (custom backward) is not implemented;
# this kernel covers the forward pass (heaviside spikes) only.


def _reference(x, dimension):
    """Pure-JAX reference: AdaptiveAvgPool2d per frame + multi-step LIF."""
    if isinstance(dimension, int):
        oh = ow = dimension
    else:
        oh, ow = dimension
    T, N, C, H, W = x.shape
    Ph = jnp.asarray(_adaptive_pool_matrix(H, oh))
    Pw = jnp.asarray(_adaptive_pool_matrix(W, ow))
    pooled = jnp.einsum("tnchw,ih,jw->tncij", x.astype(jnp.float32), Ph, Pw)
    decay = 1.0 - 1.0 / TAU

    def step(v, xt):
        v = v * decay + xt
        s = (v >= V_THRESHOLD).astype(jnp.float32)
        v = jnp.where(s > 0, 0.0, v)
        return v, s

    _, spikes = jax.lax.scan(step, jnp.zeros_like(pooled[0]), pooled)
    return spikes


if __name__ == "__main__":
    # Small shapes consistent with the module: x = [T, N, C, H, W]
    T, N, C, H, W = 8, 2, 4, 16, 16
    dimension = 4  # AdaptiveAvgPool2d output spatial size

    key = jax.random.PRNGKey(0)
    x = jax.random.normal(key, (T, N, C, H, W), dtype=jnp.float32)

    y = jax.block_until_ready(spiking_adaptive_avg_pool2d(x, dimension))

    assert y.shape == (T, N, C, dimension, dimension)
    # spikes are binary
    assert bool(jnp.all((y == 0.0) | (y == 1.0)))

    # correctness vs pure-JAX reference (spike flips exactly at threshold would
    # be fp-rounding artifacts; they do not occur at these shapes/seed)
    y_ref = _reference(x, dimension)
    mismatch = float(jnp.mean(jnp.abs(y.astype(jnp.float32) - y_ref)))
    assert mismatch < 1e-3, f"mismatch vs reference: {mismatch}"

    print("KERNEL_OK")
</pallas_src>

<mosaic_0001>
module attributes {stable_mosaic.version = 11 : i64} {
  func.func @_lif_pool_kernel(%arg0: i32, %arg1: i32, %arg2: memref<8x128x256xf32, #tpu.memory_space<vmem>>, %arg3: memref<16x256xf32, #tpu.memory_space<vmem>>, %arg4: memref<8x16x128xf32, #tpu.memory_space<vmem>>, %arg5: memref<16x128xf32, #tpu.memory_space<vmem>>) attributes {dimension_semantics = [#tpu.dimension_semantics<parallel>, #tpu.dimension_semantics<arbitrary>], iteration_bounds = array<i64: 1, 1>, scalar_prefetch = 0 : i64, scratch_operands = 1 : i64, tpu.core_type = #tpu.core_type<tc>, window_params = [{transform_indices = @transform_0, window_bounds = array<i64: 8, 128, 256>}, {pipeline_mode = #tpu.pipeline_mode<synchronous>, transform_indices = @transform_1, window_bounds = array<i64: 16, 256>}, {transform_indices = @transform_2, window_bounds = array<i64: 8, 16, 128>}]} {
    %c0_i32 = arith.constant 0 : i32
    %0 = arith.cmpi eq, %arg1, %c0_i32 : i32
    %1 = arith.extui %0 : i1 to i32
    %c0_i32_0 = arith.constant 0 : i32
    %2 = arith.cmpi ne, %1, %c0_i32_0 : i32
    scf.if %2 {
      %cst_78 = arith.constant 0.000000e+00 : f32
      %127 = vector.broadcast %cst_78 : f32 to vector<16x128xf32>
      %c0_79 = arith.constant 0 : index
      %c0_80 = arith.constant 0 : index
      %128 = vector.load %arg5[%c0_79, %c0_80] : memref<16x128xf32, #tpu.memory_space<vmem>>, vector<16x128xf32>
      tpu.vector_store %arg5[%c0_79, %c0_80], %127 {strides = array<i32>} : memref<16x128xf32, #tpu.memory_space<vmem>>, vector<16x128xf32>,
    } else {
    }
    %c0 = arith.constant 0 : index
    %c0_1 = arith.constant 0 : index
    %c0_2 = arith.constant 0 : index
    %3 = vector.load %arg2[%c0, %c0_1, %c0_2] : memref<8x128x256xf32, #tpu.memory_space<vmem>>, vector<8x128x256xf32>
    %4 = vector.shape_cast %3 : vector<8x128x256xf32> to vector<1024x256xf32>
    %c0_3 = arith.constant 0 : index
    %c0_4 = arith.constant 0 : index
    %5 = vector.load %arg3[%c0_3, %c0_4] : memref<16x256xf32, #tpu.memory_space<vmem>>, vector<16x256xf32>
    %cst = arith.constant dense<0.000000e+00> : vector<16x1024xf32>
    %6 = tpu.matmul %5, %4, %cst {dimension_numbers = #tpu.dot_dimension_numbers<[1], [1], [0], [0], [0, 0, 1, 0], [], []>} : vector<16x256xf32>, vector<1024x256xf32>, vector<16x1024xf32> -> vector<16x1024xf32>
    %7 = vector.extract_strided_slice %6 {offsets = [0, 0], sizes = [16, 128], strides = [1, 1]} : vector<16x1024xf32> to vector<16x128xf32>
    %c0_5 = arith.constant 0 : index
    %c0_6 = arith.constant 0 : index
    %8 = vector.load %arg5[%c0_5, %c0_6] : memref<16x128xf32, #tpu.memory_space<vmem>>, vector<16x128xf32>
    %cst_7 = arith.constant 2.000000e-01 : f32
    %9 = vector.broadcast %cst_7 : f32 to vector<16x128xf32>
    %10 = arith.mulf %8, %9 : vector<16x128xf32>
    %11 = arith.addf %10, %7 : vector<16x128xf32>
    %cst_8 = arith.constant 5.000000e-01 : f32
    %12 = vector.broadcast %cst_8 : f32 to vector<16x128xf32>
    %13 = arith.cmpf oge, %11, %12 : vector<16x128xf32>
    %14 = arith.extui %13 : vector<16x128xi1> to vector<16x128xi32>
    %15 = arith.sitofp %14 : vector<16x128xi32> to vector<16x128xf32>
    %c0_9 = arith.constant 0 : index
    %c0_10 = arith.constant 0 : index
    %c0_11 = arith.constant 0 : index
    %16 = vector.load %arg4[%c0_9, %c0_10, %c0_11] : memref<8x16x128xf32, #tpu.memory_space<vmem>>, vector<1x16x128xf32>
    %17 = vector.shape_cast %16 : vector<1x16x128xf32> to vector<16x128xf32>
    %18 = vector.shape_cast %15 : vector<16x128xf32> to vector<1x16x128xf32>
    tpu.vector_store %arg4[%c0_9, %c0_10, %c0_11], %18 {strides = array<i32>} : memref<8x16x128xf32, #tpu.memory_space<vmem>>, vector<1x16x128xf32>,
    %cst_12 = arith.constant 0.000000e+00 : f32
    %19 = vector.broadcast %cst_12 : f32 to vector<16x128xf32>
    %20 = arith.select %13, %19, %11 : vector<16x128xi1>, vector<16x128xf32>
    %c0_13 = arith.constant 0 : index
    %c0_14 = arith.constant 0 : index
    %21 = vector.load %arg5[%c0_13, %c0_14] : memref<16x128xf32, #tpu.memory_space<vmem>>, vector<16x128xf32>
    tpu.vector_store %arg5[%c0_13, %c0_14], %20 {strides = array<i32>} : memref<16x128xf32, #tpu.memory_space<vmem>>, vector<16x128xf32>,
    %22 = vector.extract_strided_slice %6 {offsets = [0, 128], sizes = [16, 128], strides = [1, 1]} : vector<16x1024xf32> to vector<16x128xf32>
    %c0_15 = arith.constant 0 : index
    %c0_16 = arith.constant 0 : index
    %23 = vector.load %arg5[%c0_15, %c0_16] : memref<16x128xf32, #tpu.memory_space<vmem>>, vector<16x128xf32>
    %cst_17 = arith.constant 2.000000e-01 : f32
    %24 = vector.broadcast %cst_17 : f32 to vector<16x128xf32>
    %25 = arith.mulf %23, %24 : vector<16x128xf32>
    %26 = arith.addf %25, %22 : vector<16x128xf32>
    %cst_18 = arith.constant 5.000000e-01 : f32
    %27 = vector.broadcast %cst_18 : f32 to vector<16x128xf32>
    %28 = arith.cmpf oge, %26, %27 : vector<16x128xf32>
    %29 = arith.extui %28 : vector<16x128xi1> to vector<16x128xi32>
    %30 = arith.sitofp %29 : vector<16x128xi32> to vector<16x128xf32>
    %c1 = arith.constant 1 : index
    %c0_19 = arith.constant 0 : index
    %c0_20 = arith.constant 0 : index
    %31 = vector.load %arg4[%c1, %c0_19, %c0_20] : memref<8x16x128xf32, #tpu.memory_space<vmem>>, vector<1x16x128xf32>
    %32 = vector.shape_cast %31 : vector<1x16x128xf32> to vector<16x128xf32>
    %33 = vector.shape_cast %30 : vector<16x128xf32> to vector<1x16x128xf32>
    tpu.vector_store %arg4[%c1, %c0_19, %c0_20], %33 {strides = array<i32>} : memref<8x16x128xf32, #tpu.memory_space<vmem>>, vector<1x16x128xf32>,
    %cst_21 = arith.constant 0.000000e+00 : f32
    %34 = vector.broadcast %cst_21 : f32 to vector<16x128xf32>
    %35 = arith.select %28, %34, %26 : vector<16x128xi1>, vector<16x128xf32>
    %c0_22 = arith.constant 0 : index
    %c0_23 = arith.constant 0 : index
    %36 = vector.load %arg5[%c0_22, %c0_23] : memref<16x128xf32, #tpu.memory_space<vmem>>, vector<16x128xf32>
    tpu.vector_store %arg5[%c0_22, %c0_23], %35 {strides = array<i32>} : memref<16x128xf32, #tpu.memory_space<vmem>>, vector<16x128xf32>,
    %37 = vector.extract_strided_slice %6 {offsets = [0, 256], sizes = [16, 128], strides = [1, 1]} : vector<16x1024xf32> to vector<16x128xf32>
    %c0_24 = arith.constant 0 : index
    %c0_25 = arith.constant 0 : index
    %38 = vector.load %arg5[%c0_24, %c0_25] : memref<16x128xf32, #tpu.memory_space<vmem>>, vector<16x128xf32>
    %cst_26 = arith.constant 2.000000e-01 : f32
    %39 = vector.broadcast %cst_26 : f32 to vector<16x128xf32>
    %40 = arith.mulf %38, %39 : vector<16x128xf32>
    %41 = arith.addf %40, %37 : vector<16x128xf32>
    %cst_27 = arith.constant 5.000000e-01 : f32
    %42 = vector.broadcast %cst_27 : f32 to vector<16x128xf32>
    %43 = arith.cmpf oge, %41, %42 : vector<16x128xf32>
    %44 = arith.extui %43 : vector<16x128xi1> to vector<16x128xi32>
    %45 = arith.sitofp %44 : vector<16x128xi32> to vector<16x128xf32>
    %c2 = arith.constant 2 : index
    %c0_28 = arith.constant 0 : index
    %c0_29 = arith.constant 0 : index
    %46 = vector.load %arg4[%c2, %c0_28, %c0_29] : memref<8x16x128xf32, #tpu.memory_space<vmem>>, vector<1x16x128xf32>
    %47 = vector.shape_cast %46 : vector<1x16x128xf32> to vector<16x128xf32>
    %48 = vector.shape_cast %45 : vector<16x128xf32> to vector<1x16x128xf32>
    tpu.vector_store %arg4[%c2, %c0_28, %c0_29], %48 {strides = array<i32>} : memref<8x16x128xf32, #tpu.memory_space<vmem>>, vector<1x16x128xf32>,
    %cst_30 = arith.constant 0.000000e+00 : f32
    %49 = vector.broadcast %cst_30 : f32 to vector<16x128xf32>
    %50 = arith.select %43, %49, %41 : vector<16x128xi1>, vector<16x128xf32>
    %c0_31 = arith.constant 0 : index
    %c0_32 = arith.constant 0 : index
    %51 = vector.load %arg5[%c0_31, %c0_32] : memref<16x128xf32, #tpu.memory_space<vmem>>, vector<16x128xf32>
    tpu.vector_store %arg5[%c0_31, %c0_32], %50 {strides = array<i32>} : memref<16x128xf32, #tpu.memory_space<vmem>>, vector<16x128xf32>,
    %52 = vector.extract_strided_slice %6 {offsets = [0, 384], sizes = [16, 128], strides = [1, 1]} : vector<16x1024xf32> to vector<16x128xf32>
    %c0_33 = arith.constant 0 : index
    %c0_34 = arith.constant 0 : index
    %53 = vector.load %arg5[%c0_33, %c0_34] : memref<16x128xf32, #tpu.memory_space<vmem>>, vector<16x128xf32>
    %cst_35 = arith.constant 2.000000e-01 : f32
    %54 = vector.broadcast %cst_35 : f32 to vector<16x128xf32>
    %55 = arith.mulf %53, %54 : vector<16x128xf32>
    %56 = arith.addf %55, %52 : vector<16x128xf32>
    %cst_36 = arith.constant 5.000000e-01 : f32
    %57 = vector.broadcast %cst_36 : f32 to vector<16x128xf32>
    %58 = arith.cmpf oge, %56, %57 : vector<16x128xf32>
    %59 = arith.extui %58 : vector<16x128xi1> to vector<16x128xi32>
    %60 = arith.sitofp %59 : vector<16x128xi32> to vector<16x128xf32>
    %c3 = arith.constant 3 : index
    %c0_37 = arith.constant 0 : index
    %c0_38 = arith.constant 0 : index
    %61 = vector.load %arg4[%c3, %c0_37, %c0_38] : memref<8x16x128xf32, #tpu.memory_space<vmem>>, vector<1x16x128xf32>
    %62 = vector.shape_cast %61 : vector<1x16x128xf32> to vector<16x128xf32>
    %63 = vector.shape_cast %60 : vector<16x128xf32> to vector<1x16x128xf32>
    tpu.vector_store %arg4[%c3, %c0_37, %c0_38], %63 {strides = array<i32>} : memref<8x16x128xf32, #tpu.memory_space<vmem>>, vector<1x16x128xf32>,
    %cst_39 = arith.constant 0.000000e+00 : f32
    %64 = vector.broadcast %cst_39 : f32 to vector<16x128xf32>
    %65 = arith.select %58, %64, %56 : vector<16x128xi1>, vector<16x128xf32>
    %c0_40 = arith.constant 0 : index
    %c0_41 = arith.constant 0 : index
    %66 = vector.load %arg5[%c0_40, %c0_41] : memref<16x128xf32, #tpu.memory_space<vmem>>, vector<16x128xf32>
    tpu.vector_store %arg5[%c0_40, %c0_41], %65 {strides = array<i32>} : memref<16x128xf32, #tpu.memory_space<vmem>>, vector<16x128xf32>,
    %67 = vector.extract_strided_slice %6 {offsets = [0, 512], sizes = [16, 128], strides = [1, 1]} : vector<16x1024xf32> to vector<16x128xf32>
    %c0_42 = arith.constant 0 : index
    %c0_43 = arith.constant 0 : index
    %68 = vector.load %arg5[%c0_42, %c0_43] : memref<16x128xf32, #tpu.memory_space<vmem>>, vector<16x128xf32>
    %cst_44 = arith.constant 2.000000e-01 : f32
    %69 = vector.broadcast %cst_44 : f32 to vector<16x128xf32>
    %70 = arith.mulf %68, %69 : vector<16x128xf32>
    %71 = arith.addf %70, %67 : vector<16x128xf32>
    %cst_45 = arith.constant 5.000000e-01 : f32
    %72 = vector.broadcast %cst_45 : f32 to vector<16x128xf32>
    %73 = arith.cmpf oge, %71, %72 : vector<16x128xf32>
    %74 = arith.extui %73 : vector<16x128xi1> to vector<16x128xi32>
    %75 = arith.sitofp %74 : vector<16x128xi32> to vector<16x128xf32>
    %c4 = arith.constant 4 : index
    %c0_46 = arith.constant 0 : index
    %c0_47 = arith.constant 0 : index
    %76 = vector.load %arg4[%c4, %c0_46, %c0_47] : memref<8x16x128xf32, #tpu.memory_space<vmem>>, vector<1x16x128xf32>
    %77 = vector.shape_cast %76 : vector<1x16x128xf32> to vector<16x128xf32>
    %78 = vector.shape_cast %75 : vector<16x128xf32> to vector<1x16x128xf32>
    tpu.vector_store %arg4[%c4, %c0_46, %c0_47], %78 {strides = array<i32>} : memref<8x16x128xf32, #tpu.memory_space<vmem>>, vector<1x16x128xf32>,
    %cst_48 = arith.constant 0.000000e+00 : f32
    %79 = vector.broadcast %cst_48 : f32 to vector<16x128xf32>
    %80 = arith.select %73, %79, %71 : vector<16x128xi1>, vector<16x128xf32>
    %c0_49 = arith.constant 0 : index
    %c0_50 = arith.constant 0 : index
    %81 = vector.load %arg5[%c0_49, %c0_50] : memref<16x128xf32, #tpu.memory_space<vmem>>, vector<16x128xf32>
    tpu.vector_store %arg5[%c0_49, %c0_50], %80 {strides = array<i32>} : memref<16x128xf32, #tpu.memory_space<vmem>>, vector<16x128xf32>,
    %82 = vector.extract_strided_slice %6 {offsets = [0, 640], sizes = [16, 128], strides = [1, 1]} : vector<16x1024xf32> to vector<16x128xf32>
    %c0_51 = arith.constant 0 : index
    %c0_52 = arith.constant 0 : index
    %83 = vector.load %arg5[%c0_51, %c0_52] : memref<16x128xf32, #tpu.memory_space<vmem>>, vector<16x128xf32>
    %cst_53 = arith.constant 2.000000e-01 : f32
    %84 = vector.broadcast %cst_53 : f32 to vector<16x128xf32>
    %85 = arith.mulf %83, %84 : vector<16x128xf32>
    %86 = arith.addf %85, %82 : vector<16x128xf32>
    %cst_54 = arith.constant 5.000000e-01 : f32
    %87 = vector.broadcast %cst_54 : f32 to vector<16x128xf32>
    %88 = arith.cmpf oge, %86, %87 : vector<16x128xf32>
    %89 = arith.extui %88 : vector<16x128xi1> to vector<16x128xi32>
    %90 = arith.sitofp %89 : vector<16x128xi32> to vector<16x128xf32>
    %c5 = arith.constant 5 : index
    %c0_55 = arith.constant 0 : index
    %c0_56 = arith.constant 0 : index
    %91 = vector.load %arg4[%c5, %c0_55, %c0_56] : memref<8x16x128xf32, #tpu.memory_space<vmem>>, vector<1x16x128xf32>
    %92 = vector.shape_cast %91 : vector<1x16x128xf32> to vector<16x128xf32>
    %93 = vector.shape_cast %90 : vector<16x128xf32> to vector<1x16x128xf32>
    tpu.vector_store %arg4[%c5, %c0_55, %c0_56], %93 {strides = array<i32>} : memref<8x16x128xf32, #tpu.memory_space<vmem>>, vector<1x16x128xf32>,
    %cst_57 = arith.constant 0.000000e+00 : f32
    %94 = vector.broadcast %cst_57 : f32 to vector<16x128xf32>
    %95 = arith.select %88, %94, %86 : vector<16x128xi1>, vector<16x128xf32>
    %c0_58 = arith.constant 0 : index
    %c0_59 = arith.constant 0 : index
    %96 = vector.load %arg5[%c0_58, %c0_59] : memref<16x128xf32, #tpu.memory_space<vmem>>, vector<16x128xf32>
    tpu.vector_store %arg5[%c0_58, %c0_59], %95 {strides = array<i32>} : memref<16x128xf32, #tpu.memory_space<vmem>>, vector<16x128xf32>,
    %97 = vector.extract_strided_slice %6 {offsets = [0, 768], sizes = [16, 128], strides = [1, 1]} : vector<16x1024xf32> to vector<16x128xf32>
    %c0_60 = arith.constant 0 : index
    %c0_61 = arith.constant 0 : index
    %98 = vector.load %arg5[%c0_60, %c0_61] : memref<16x128xf32, #tpu.memory_space<vmem>>, vector<16x128xf32>
    %cst_62 = arith.constant 2.000000e-01 : f32
    %99 = vector.broadcast %cst_62 : f32 to vector<16x128xf32>
    %100 = arith.mulf %98, %99 : vector<16x128xf32>
    %101 = arith.addf %100, %97 : vector<16x128xf32>
    %cst_63 = arith.constant 5.000000e-01 : f32
    %102 = vector.broadcast %cst_63 : f32 to vector<16x128xf32>
    %103 = arith.cmpf oge, %101, %102 : vector<16x128xf32>
    %104 = arith.extui %103 : vector<16x128xi1> to vector<16x128xi32>
    %105 = arith.sitofp %104 : vector<16x128xi32> to vector<16x128xf32>
    %c6 = arith.constant 6 : index
    %c0_64 = arith.constant 0 : index
    %c0_65 = arith.constant 0 : index
    %106 = vector.load %arg4[%c6, %c0_64, %c0_65] : memref<8x16x128xf32, #tpu.memory_space<vmem>>, vector<1x16x128xf32>
    %107 = vector.shape_cast %106 : vector<1x16x128xf32> to vector<16x128xf32>
    %108 = vector.shape_cast %105 : vector<16x128xf32> to vector<1x16x128xf32>
    tpu.vector_store %arg4[%c6, %c0_64, %c0_65], %108 {strides = array<i32>} : memref<8x16x128xf32, #tpu.memory_space<vmem>>, vector<1x16x128xf32>,
    %cst_66 = arith.constant 0.000000e+00 : f32
    %109 = vector.broadcast %cst_66 : f32 to vector<16x128xf32>
    %110 = arith.select %103, %109, %101 : vector<16x128xi1>, vector<16x128xf32>
    %c0_67 = arith.constant 0 : index
    %c0_68 = arith.constant 0 : index
    %111 = vector.load %arg5[%c0_67, %c0_68] : memref<16x128xf32, #tpu.memory_space<vmem>>, vector<16x128xf32>
    tpu.vector_store %arg5[%c0_67, %c0_68], %110 {strides = array<i32>} : memref<16x128xf32, #tpu.memory_space<vmem>>, vector<16x128xf32>,
    %112 = vector.extract_strided_slice %6 {offsets = [0, 896], sizes = [16, 128], strides = [1, 1]} : vector<16x1024xf32> to vector<16x128xf32>
    %c0_69 = arith.constant 0 : index
    %c0_70 = arith.constant 0 : index
    %113 = vector.load %arg5[%c0_69, %c0_70] : memref<16x128xf32, #tpu.memory_space<vmem>>, vector<16x128xf32>
    %cst_71 = arith.constant 2.000000e-01 : f32
    %114 = vector.broadcast %cst_71 : f32 to vector<16x128xf32>
    %115 = arith.mulf %113, %114 : vector<16x128xf32>
    %116 = arith.addf %115, %112 : vector<16x128xf32>
    %cst_72 = arith.constant 5.000000e-01 : f32
    %117 = vector.broadcast %cst_72 : f32 to vector<16x128xf32>
    %118 = arith.cmpf oge, %116, %117 : vector<16x128xf32>
    %119 = arith.extui %118 : vector<16x128xi1> to vector<16x128xi32>
    %120 = arith.sitofp %119 : vector<16x128xi32> to vector<16x128xf32>
    %c7 = arith.constant 7 : index
    %c0_73 = arith.constant 0 : index
    %c0_74 = arith.constant 0 : index
    %121 = vector.load %arg4[%c7, %c0_73, %c0_74] : memref<8x16x128xf32, #tpu.memory_space<vmem>>, vector<1x16x128xf32>
    %122 = vector.shape_cast %121 : vector<1x16x128xf32> to vector<16x128xf32>
    %123 = vector.shape_cast %120 : vector<16x128xf32> to vector<1x16x128xf32>
    tpu.vector_store %arg4[%c7, %c0_73, %c0_74], %123 {strides = array<i32>} : memref<8x16x128xf32, #tpu.memory_space<vmem>>, vector<1x16x128xf32>,
    %cst_75 = arith.constant 0.000000e+00 : f32
    %124 = vector.broadcast %cst_75 : f32 to vector<16x128xf32>
    %125 = arith.select %118, %124, %116 : vector<16x128xi1>, vector<16x128xf32>
    %c0_76 = arith.constant 0 : index
    %c0_77 = arith.constant 0 : index
    %126 = vector.load %arg5[%c0_76, %c0_77] : memref<16x128xf32, #tpu.memory_space<vmem>>, vector<16x128xf32>
    tpu.vector_store %arg5[%c0_76, %c0_77], %125 {strides = array<i32>} : memref<16x128xf32, #tpu.memory_space<vmem>>, vector<16x128xf32>,
    return
  }
  func.func @transform_0(%arg0: i32, %arg1: i32) -> (i32, i32, i32) {
    %c0_i32 = arith.constant 0 : i32
    %c0_i32_0 = arith.constant 0 : i32
    return %arg1, %arg0, %c0_i32 : i32, i32, i32
  }
  func.func @transform_1(%arg0: i32, %arg1: i32) -> (i32, i32) {
    %c0_i32 = arith.constant 0 : i32
    %c0_i32_0 = arith.constant 0 : i32
    %c0_i32_1 = arith.constant 0 : i32
    return %c0_i32, %c0_i32_0 : i32, i32
  }
  func.func @transform_2(%arg0: i32, %arg1: i32) -> (i32, i32, i32) {
    %c0_i32 = arith.constant 0 : i32
    %c0_i32_0 = arith.constant 0 : i32
    return %arg1, %c0_i32, %arg0 : i32, i32, i32
  }
}

</mosaic_0001>

<llo_original>
// kernel: tpu_custom_call.1
$region0: #{tpu_custom_call.1}
  #allocation0 [shape = 'u32[]', space=smem, size = 0x4, offset = 0x4, fixed_abs, tag = 'smem constant byte address 0x4 - core index']
  #allocation1 [shape = 'u32[72,128]{1,0:T(1,128)}', space=vmem, size = 0x9000, scoped, tag = 'internal scratch']
  #allocation2 [shape = 'f32[16,128]{1,0:T(8,128)}', space=vmem, size = 0x2000, scoped, tag = 'scratch operand']
  %s0 = inlined_call_operand.hbm [shape: f32[8,128,256], index: 0, kind: input, shape index: {}]
  %s1 = inlined_call_operand.hbm [shape: f32[16,256], index: 1, kind: input, shape index: {}]
  %s2 = inlined_call_operand.hbm [shape: f32[8,16,128], index: 2, kind: output, shape index: {}]
  %s3 = sld [smem:[#allocation0]]
  $region30: #{tpu_custom_call.1} parent=0
    _
  %s5 = ssub.s32 1, %s3
  %s6 = scalar_select 0, %s5, %s3
  $region1: #{tpu_custom_call.1} parent=0
    #allocation3 [shape = 'u8[1048576]{0}', space=vmem, size = 0x100000, scoped, tag = 'input window, operand 0, single buffered']
    #allocation4 [shape = 's32[1]{0}', space=sflag, size = 0x4, scoped, tag = 'scoped memory for tpu_custom_call.1']
    #allocation5 [shape = 's32[1]{0}', space=sflag, size = 0x4, scoped, tag = 'scoped memory for tpu_custom_call.1']
    #allocation6 [shape = 'u8[16384]{0}', space=vmem, size = 0x4000, scoped, tag = 'input window, operand 1, single buffered']
    #allocation7 [shape = 's32[1]{0}', space=sflag, size = 0x4, scoped, tag = 'scoped memory for tpu_custom_call.1']
    #allocation8 [shape = 'u8[65536]{0}', space=vmem, size = 0x10000, scoped, tag = 'output window, operand 0, single buffered']
    %7 = vsyncpa [#allocation4], 0
    %8 = vsyncpa [#allocation7], 0
    %9 = vsyncpa [#allocation5], 0
    // Predicated region
    $region2: #{tpu_custom_call.1} parent=1 // pred_check
      _
    $region3: #{tpu_custom_call.1} parent=1 // pred_check_branch
      %11 = sbr.rel (0) target = $region5
    $region4: #{tpu_custom_call.1} parent=1 // pred_region
      %13 = vsyncadd [#allocation4], 0
      %s14 = sshll.u32 %s0, 4
      %s15 = int_to_ptr.hbm [resolvable:$true] %s14
      %s16 = sshll.u32 [#allocation3], 4
      %s17 = int_to_ptr.vmem [resolvable:$true] %s16
      %22 = dma.hbm_to_vmem [thread:$0]  %s15, 32768, %s17, [#allocation4], 256, 256, 16
    $region5: #{tpu_custom_call.1} parent=1 // pred_fallthru
      _
    // Predicated region
    $region6: #{tpu_custom_call.1} parent=1 // pred_check
      _
    $region7: #{tpu_custom_call.1} parent=1 // pred_check_branch
      %24 = sbr.rel (0) target = $region9
    $region8: #{tpu_custom_call.1} parent=1 // pred_region
      %26 = vsyncadd [#allocation7], 0
      %s27 = sshll.u32 %s1, 4
      %s28 = int_to_ptr.hbm [resolvable:$true] %s27
      %s29 = sshll.u32 [#allocation6], 4
      %s30 = int_to_ptr.vmem [resolvable:$true] %s29
      %35 = dma.hbm_to_vmem [thread:$0]  %s28, 512, %s30, [#allocation7], 256, 256, 16
    $region9: #{tpu_custom_call.1} parent=1 // pred_fallthru
      _
    // Predicated region
    $region10: #{tpu_custom_call.1} parent=1 // pred_check
      _
    $region11: #{tpu_custom_call.1} parent=1 // pred_check_branch
      %37 = sbr.rel (0) target = $region13
    $region12: #{tpu_custom_call.1} parent=1 // pred_region
      %39 = dma.done [#allocation4], 32768
    $region13: #{tpu_custom_call.1} parent=1 // pred_fallthru
      _
    // Predicated region
    $region14: #{tpu_custom_call.1} parent=1 // pred_check
      _
    $region15: #{tpu_custom_call.1} parent=1 // pred_check_branch
      %41 = sbr.rel (0) target = $region17
    $region16: #{tpu_custom_call.1} parent=1 // pred_region
      %43 = dma.done [#allocation7], 512
    $region17: #{tpu_custom_call.1} parent=1 // pred_fallthru
      _
    %p44 = scmp.eq.s32.totalorder 0, 0
    // Predicated region
    $region18: #{tpu_custom_call.1} parent=1 // pred_check
      %p45 = pneg %p44
    $region19: #{tpu_custom_call.1} parent=1 // pred_check_branch
      %47 = sbr.rel (%p45) target = $region21
    $region20: #{tpu_custom_call.1} parent=1 // pred_region
      %48 = vst [vmem:[#allocation2] sm:$0xff] 0.0
      %49 = vst [vmem:[#allocation2 + $0x8] sm:$0xff] 0.0
    $region21: #{tpu_custom_call.1} parent=1 // pred_fallthru
      _
    %v50 = vld [vmem:[#allocation3] sm:$0xff]
    %v51 = vld [vmem:[#allocation3 + $0x8] sm:$0xff]
    %v52 = vld [vmem:[#allocation3 + $0x10] sm:$0xff]
    %v53 = vld [vmem:[#allocation3 + $0x18] sm:$0xff]
    %v54 = vld [vmem:[#allocation3 + $0x20] sm:$0xff]
    %v55 = vld [vmem:[#allocation3 + $0x28] sm:$0xff]
    %v56 = vld [vmem:[#allocation3 + $0x30] sm:$0xff]
    %v57 = vld [vmem:[#allocation3 + $0x38] sm:$0xff]
    %v58 = vld [vmem:[#allocation3 + $0x40] sm:$0xff]
    %v59 = vld [vmem:[#allocation3 + $0x48] sm:$0xff]
    %v60 = vld [vmem:[#allocation3 + $0x50] sm:$0xff]
    %v61 = vld [vmem:[#allocation3 + $0x58] sm:$0xff]
    %v62 = vld [vmem:[#allocation3 + $0x60] sm:$0xff]
    %v63 = vld [vmem:[#allocation3 + $0x68] sm:$0xff]
    %v64 = vld [vmem:[#allocation3 + $0x70] sm:$0xff]
    %v65 = vld [vmem:[#allocation3 + $0x78] sm:$0xff]
    %v66 = vld [vmem:[#allocation3 + $0x80] sm:$0xff]
    %v67 = vld [vmem:[#allocation3 + $0x88] sm:$0xff]
    %v68 = vld [vmem:[#allocation3 + $0x90] sm:$0xff]
    %v69 = vld [vmem:[#allocation3 + $0x98] sm:$0xff]
    %v70 = vld [vmem:[#allocation3 + $0xa0] sm:$0xff]
    %v71 = vld [vmem:[#allocation3 + $0xa8] sm:$0xff]
    %v72 = vld [vmem:[#allocation3 + $0xb0] sm:$0xff]
    %v73 = vld [vmem:[#allocation3 + $0xb8] sm:$0xff]
    %v74 = vld [vmem:[#allocation3 + $0xc0] sm:$0xff]
    %v75 = vld [vmem:[#allocation3 + $0xc8] sm:$0xff]
    %v76 = vld [vmem:[#allocation3 + $0xd0] sm:$0xff]
    %v77 = vld [vmem:[#allocation3 + $0xd8] sm:$0xff]
    %v78 = vld [vmem:[#allocation3 + $0xe0] sm:$0xff]
    %v79 = vld [vmem:[#allocation3 + $0xe8] sm:$0xff]
    %v80 = vld [vmem:[#allocation3 + $0xf0] sm:$0xff]
    %v81 = vld [vmem:[#allocation3 + $0xf8] sm:$0xff]
    %v82 = vld [vmem:[#allocation3 + $0x100] sm:$0xff]
    %v83 = vld [vmem:[#allocation3 + $0x108] sm:$0xff]
    %v84 = vld [vmem:[#allocation3 + $0x110] sm:$0xff]
    %v85 = vld [vmem:[#allocation3 + $0x118] sm:$0xff]
    %v86 = vld [vmem:[#allocation3 + $0x120] sm:$0xff]
    %v87 = vld [vmem:[#allocation3 + $0x128] sm:$0xff]
    %v88 = vld [vmem:[#allocation3 + $0x130] sm:$0xff]
    %v89 = vld [vmem:[#allocation3 + $0x138] sm:$0xff]
    %v90 = vld [vmem:[#allocation3 + $0x140] sm:$0xff]
    %v91 = vld [vmem:[#allocation3 + $0x148] sm:$0xff]
    %v92 = vld [vmem:[#allocation3 + $0x150] sm:$0xff]
    %v93 = vld [vmem:[#allocation3 + $0x158] sm:$0xff]
    %v94 = vld [vmem:[#allocation3 + $0x160] sm:$0xff]
    %v95 = vld [vmem:[#allocation3 + $0x168] sm:$0xff]
    %v96 = vld [vmem:[#allocation3 + $0x170] sm:$0xff]
    %v97 = vld [vmem:[#allocation3 + $0x178] sm:$0xff]
    %v98 = vld [vmem:[#allocation3 + $0x180] sm:$0xff]
    %v99 = vld [vmem:[#allocation3 + $0x188] sm:$0xff]
    %v100 = vld [vmem:[#allocation3 + $0x190] sm:$0xff]
    %v101 = vld [vmem:[#allocation3 + $0x198] sm:$0xff]
    %v102 = vld [vmem:[#allocation3 + $0x1a0] sm:$0xff]
    %v103 = vld [vmem:[#allocation3 + $0x1a8] sm:$0xff]
    %v104 = vld [vmem:[#allocation3 + $0x1b0] sm:$0xff]
    %v105 = vld [vmem:[#allocation3 + $0x1b8] sm:$0xff]
    %v106 = vld [vmem:[#allocation3 + $0x1c0] sm:$0xff]
    %v107 = vld [vmem:[#allocation3 + $0x1c8] sm:$0xff]
    %v108 = vld [vmem:[#allocation3 + $0x1d0] sm:$0xff]
    %v109 = vld [vmem:[#allocation3 + $0x1d8] sm:$0xff]
    %v110 = vld [vmem:[#allocation3 + $0x1e0] sm:$0xff]
    %v111 = vld [vmem:[#allocation3 + $0x1e8] sm:$0xff]
    %v112 = vld [vmem:[#allocation3 + $0x1f0] sm:$0xff]
    %v113 = vld [vmem:[#allocation3 + $0x1f8] sm:$0xff]
    %v114 = vld [vmem:[#allocation3 + $0x200] sm:$0xff]
    %v115 = vld [vmem:[#allocation3 + $0x208] sm:$0xff]
    %v116 = vld [vmem:[#allocation3 + $0x210] sm:$0xff]
    %v117 = vld [vmem:[#allocation3 + $0x218] sm:$0xff]
    %v118 = vld [vmem:[#allocation3 + $0x220] sm:$0xff]
    %v119 = vld [vmem:[#allocation3 + $0x228] sm:$0xff]
    %v120 = vld [vmem:[#allocation3 + $0x230] sm:$0xff]
    %v121 = vld [vmem:[#allocation3 + $0x238] sm:$0xff]
    %v122 = vld [vmem:[#allocation3 + $0x240] sm:$0xff]
    %v123 = vld [vmem:[#allocation3 + $0x248] sm:$0xff]
    %v124 = vld [vmem:[#allocation3 + $0x250] sm:$0xff]
    %v125 = vld [vmem:[#allocation3 + $0x258] sm:$0xff]
    %v126 = vld [vmem:[#allocation3 + $0x260] sm:$0xff]
    %v127 = vld [vmem:[#allocation3 + $0x268] sm:$0xff]
    %v128 = vld [vmem:[#allocation3 + $0x270] sm:$0xff]
    %v129 = vld [vmem:[#allocation3 + $0x278] sm:$0xff]
    %v130 = vld [vmem:[#allocation3 + $0x280] sm:$0xff]
    %v131 = vld [vmem:[#allocation3 + $0x288] sm:$0xff]
    %v132 = vld [vmem:[#allocation3 + $0x290] sm:$0xff]
    %v133 = vld [vmem:[#allocation3 + $0x298] sm:$0xff]
    %v134 = vld [vmem:[#allocation3 + $0x2a0] sm:$0xff]
    %v135 = vld [vmem:[#allocation3 + $0x2a8] sm:$0xff]
    %v136 = vld [vmem:[#allocation3 + $0x2b0] sm:$0xff]
    %v137 = vld [vmem:[#allocation3 + $0x2b8] sm:$0xff]
    %v138 = vld [vmem:[#allocation3 + $0x2c0] sm:$0xff]
    %v139 = vld [vmem:[#allocation3 + $0x2c8] sm:$0xff]
    %v140 = vld [vmem:[#allocation3 + $0x2d0] sm:$0xff]
    %v141 = vld [vmem:[#allocation3 + $0x2d8] sm:$0xff]
    %v142 = vld [vmem:[#allocation3 + $0x2e0] sm:$0xff]
    %v143 = vld [vmem:[#allocation3 + $0x2e8] sm:$0xff]
    %v144 = vld [vmem:[#allocation3 + $0x2f0] sm:$0xff]
    %v145 = vld [vmem:[#allocation3 + $0x2f8] sm:$0xff]
    %v146 = vld [vmem:[#allocation3 + $0x300] sm:$0xff]
    %v147 = vld [vmem:[#allocation3 + $0x308] sm:$0xff]
    %v148 = vld [vmem:[#allocation3 + $0x310] sm:$0xff]
    %v149 = vld [vmem:[#allocation3 + $0x318] sm:$0xff]
    %v150 = vld [vmem:[#allocation3 + $0x320] sm:$0xff]
    %v151 = vld [vmem:[#allocation3 + $0x328] sm:$0xff]
    %v152 = vld [vmem:[#allocation3 + $0x330] sm:$0xff]
    %v153 = vld [vmem:[#allocation3 + $0x338] sm:$0xff]
    %v154 = vld [vmem:[#allocation3 + $0x340] sm:$0xff]
    %v155 = vld [vmem:[#allocation3 + $0x348] sm:$0xff]
    %v156 = vld [vmem:[#allocation3 + $0x350] sm:$0xff]
    %v157 = vld [vmem:[#allocation3 + $0x358] sm:$0xff]
    %v158 = vld [vmem:[#allocation3 + $0x360] sm:$0xff]
    %v159 = vld [vmem:[#allocation3 + $0x368] sm:$0xff]
    %v160 = vld [vmem:[#allocation3 + $0x370] sm:$0xff]
    %v161 = vld [vmem:[#allocation3 + $0x378] sm:$0xff]
    %v162 = vld [vmem:[#allocation3 + $0x380] sm:$0xff]
    %v163 = vld [vmem:[#allocation3 + $0x388] sm:$0xff]
    %v164 = vld [vmem:[#allocation3 + $0x390] sm:$0xff]
    %v165 = vld [vmem:[#allocation3 + $0x398] sm:$0xff]
    %v166 = vld [vmem:[#allocation3 + $0x3a0] sm:$0xff]
    %v167 = vld [vmem:[#allocation3 + $0x3a8] sm:$0xff]
    %v168 = vld [vmem:[#allocation3 + $0x3b0] sm:$0xff]
    %v169 = vld [vmem:[#allocation3 + $0x3b8] sm:$0xff]
    %v170 = vld [vmem:[#allocation3 + $0x3c0] sm:$0xff]
    %v171 = vld [vmem:[#allocation3 + $0x3c8] sm:$0xff]
    %v172 = vld [vmem:[#allocation3 + $0x3d0] sm:$0xff]
    %v173 = vld [vmem:[#allocation3 + $0x3d8] sm:$0xff]
    %v174 = vld [vmem:[#allocation3 + $0x3e0] sm:$0xff]
    %v175 = vld [vmem:[#allocation3 + $0x3e8] sm:$0xff]
    %v176 = vld [vmem:[#allocation3 + $0x3f0] sm:$0xff]
    %v177 = vld [vmem:[#allocation3 + $0x3f8] sm:$0xff]
    %v178 = vld [vmem:[#allocation3 + $0x400] sm:$0xff]
    %v179 = vld [vmem:[#allocation3 + $0x408] sm:$0xff]
    %v180 = vld [vmem:[#allocation3 + $0x410] sm:$0xff]
    %v181 = vld [vmem:[#allocation3 + $0x418] sm:$0xff]
    %v182 = vld [vmem:[#allocation3 + $0x420] sm:$0xff]
    %v183 = vld [vmem:[#allocation3 + $0x428] sm:$0xff]
    %v184 = vld [vmem:[#allocation3 + $0x430] sm:$0xff]
    %v185 = vld [vmem:[#allocation3 + $0x438] sm:$0xff]
    %v186 = vld [vmem:[#allocation3 + $0x440] sm:$0xff]
    %v187 = vld [vmem:[#allocation3 + $0x448] sm:$0xff]
    %v188 = vld [vmem:[#allocation3 + $0x450] sm:$0xff]
    %v189 = vld [vmem:[#allocation3 + $0x458] sm:$0xff]
    %v190 = vld [vmem:[#allocation3 + $0x460] sm:$0xff]
    %v191 = vld [vmem:[#allocation3 + $0x468] sm:$0xff]
    %v192 = vld [vmem:[#allocation3 + $0x470] sm:$0xff]
    %v193 = vld [vmem:[#allocation3 + $0x478] sm:$0xff]
    %v194 = vld [vmem:[#allocation3 + $0x480] sm:$0xff]
    %v195 = vld [vmem:[#allocation3 + $0x488] sm:$0xff]
    %v196 = vld [vmem:[#allocation3 + $0x490] sm:$0xff]
    %v197 = vld [vmem:[#allocation3 + $0x498] sm:$0xff]
    %v198 = vld [vmem:[#allocation3 + $0x4a0] sm:$0xff]
    %v199 = vld [vmem:[#allocation3 + $0x4a8] sm:$0xff]
    %v200 = vld [vmem:[#allocation3 + $0x4b0] sm:$0xff]
    %v201 = vld [vmem:[#allocation3 + $0x4b8] sm:$0xff]
    %v202 = vld [vmem:[#allocation3 + $0x4c0] sm:$0xff]
    %v203 = vld [vmem:[#allocation3 + $0x4c8] sm:$0xff]
    %v204 = vld [vmem:[#allocation3 + $0x4d0] sm:$0xff]
    %v205 = vld [vmem:[#allocation3 + $0x4d8] sm:$0xff]
    %v206 = vld [vmem:[#allocation3 + $0x4e0] sm:$0xff]
    %v207 = vld [vmem:[#allocation3 + $0x4e8] sm:$0xff]
    %v208 = vld [vmem:[#allocation3 + $0x4f0] sm:$0xff]
    %v209 = vld [vmem:[#allocation3 + $0x4f8] sm:$0xff]
    %v210 = vld [vmem:[#allocation3 + $0x500] sm:$0xff]
    %v211 = vld [vmem:[#allocation3 + $0x508] sm:$0xff]
    %v212 = vld [vmem:[#allocation3 + $0x510] sm:$0xff]
    %v213 = vld [vmem:[#allocation3 + $0x518] sm:$0xff]
    %v214 = vld [vmem:[#allocation3 + $0x520] sm:$0xff]
    %v215 = vld [vmem:[#allocation3 + $0x528] sm:$0xff]
    %v216 = vld [vmem:[#allocation3 + $0x530] sm:$0xff]
    %v217 = vld [vmem:[#allocation3 + $0x538] sm:$0xff]
    %v218 = vld [vmem:[#allocation3 + $0x540] sm:$0xff]
    %v219 = vld [vmem:[#allocation3 + $0x548] sm:$0xff]
    %v220 = vld [vmem:[#allocation3 + $0x550] sm:$0xff]
    %v221 = vld [vmem:[#allocation3 + $0x558] sm:$0xff]
    %v222 = vld [vmem:[#allocation3 + $0x560] sm:$0xff]
    %v223 = vld [vmem:[#allocation3 + $0x568] sm:$0xff]
    %v224 = vld [vmem:[#allocation3 + $0x570] sm:$0xff]
    %v225 = vld [vmem:[#allocation3 + $0x578] sm:$0xff]
    %v226 = vld [vmem:[#allocation3 + $0x580] sm:$0xff]
    %v227 = vld [vmem:[#allocation3 + $0x588] sm:$0xff]
    %v228 = vld [vmem:[#allocation3 + $0x590] sm:$0xff]
    %v229 = vld [vmem:[#allocation3 + $0x598] sm:$0xff]
    %v230 = vld [vmem:[#allocation3 + $0x5a0] sm:$0xff]
    %v231 = vld [vmem:[#allocation3 + $0x5a8] sm:$0xff]
    %v232 = vld [vmem:[#allocation3 + $0x5b0] sm:$0xff]
    %v233 = vld [vmem:[#allocation3 + $0x5b8] sm:$0xff]
    %v234 = vld [vmem:[#allocation3 + $0x5c0] sm:$0xff]
    %v235 = vld [vmem:[#allocation3 + $0x5c8] sm:$0xff]
    %v236 = vld [vmem:[#allocation3 + $0x5d0] sm:$0xff]
    %v237 = vld [vmem:[#allocation3 + $0x5d8] sm:$0xff]
    %v238 = vld [vmem:[#allocation3 + $0x5e0] sm:$0xff]
    %v239 = vld [vmem:[#allocation3 + $0x5e8] sm:$0xff]
    %v240 = vld [vmem:[#allocation3 + $0x5f0] sm:$0xff]
    %v241 = vld [vmem:[#allocation3 + $0x5f8] sm:$0xff]
    %v242 = vld [vmem:[#allocation3 + $0x600] sm:$0xff]
    %v243 = vld [vmem:[#allocation3 + $0x608] sm:$0xff]
    %v244 = vld [vmem:[#allocation3 + $0x610] sm:$0xff]
    %v245 = vld [vmem:[#allocation3 + $0x618] sm:$0xff]
    %v246 = vld [vmem:[#allocation3 + $0x620] sm:$0xff]
    %v247 = vld [vmem:[#allocation3 + $0x628] sm:$0xff]
    %v248 = vld [vmem:[#allocation3 + $0x630] sm:$0xff]
    %v249 = vld [vmem:[#allocation3 + $0x638] sm:$0xff]
    %v250 = vld [vmem:[#allocation3 + $0x640] sm:$0xff]
    %v251 = vld [vmem:[#allocation3 + $0x648] sm:$0xff]
    %v252 = vld [vmem:[#allocation3 + $0x650] sm:$0xff]
    %v253 = vld [vmem:[#allocation3 + $0x658] sm:$0xff]
    %v254 = vld [vmem:[#allocation3 + $0x660] sm:$0xff]
    %v255 = vld [vmem:[#allocation3 + $0x668] sm:$0xff]
    %v256 = vld [vmem:[#allocation3 + $0x670] sm:$0xff]
    %v257 = vld [vmem:[#allocation3 + $0x678] sm:$0xff]
    %v258 = vld [vmem:[#allocation3 + $0x680] sm:$0xff]
    %v259 = vld [vmem:[#allocation3 + $0x688] sm:$0xff]
    %v260 = vld [vmem:[#allocation3 + $0x690] sm:$0xff]
    %v261 = vld [vmem:[#allocation3 + $0x698] sm:$0xff]
    %v262 = vld [vmem:[#allocation3 + $0x6a0] sm:$0xff]
    %v263 = vld [vmem:[#allocation3 + $0x6a8] sm:$0xff]
    %v264 = vld [vmem:[#allocation3 + $0x6b0] sm:$0xff]
    %v265 = vld [vmem:[#allocation3 + $0x6b8] sm:$0xff]
    %v266 = vld [vmem:[#allocation3 + $0x6c0] sm:$0xff]
    %v267 = vld [vmem:[#allocation3 + $0x6c8] sm:$0xff]
    %v268 = vld [vmem:[#allocation3 + $0x6d0] sm:$0xff]
    %v269 = vld [vmem:[#allocation3 + $0x6d8] sm:$0xff]
    %v270 = vld [vmem:[#allocation3 + $0x6e0] sm:$0xff]
    %v271 = vld [vmem:[#allocation3 + $0x6e8] sm:$0xff]
    %v272 = vld [vmem:[#allocation3 + $0x6f0] sm:$0xff]
    %v273 = vld [vmem:[#allocation3 + $0x6f8] sm:$0xff]
    %v274 = vld [vmem:[#allocation3 + $0x700] sm:$0xff]
    %v275 = vld [vmem:[#allocation3 + $0x708] sm:$0xff]
    %v276 = vld [vmem:[#allocation3 + $0x710] sm:$0xff]
    %v277 = vld [vmem:[#allocation3 + $0x718] sm:$0xff]
    %v278 = vld [vmem:[#allocation3 + $0x720] sm:$0xff]
    %v279 = vld [vmem:[#allocation3 + $0x728] sm:$0xff]
    %v280 = vld [vmem:[#allocation3 + $0x730] sm:$0xff]
    %v281 = vld [vmem:[#allocation3 + $0x738] sm:$0xff]
    %v282 = vld [vmem:[#allocation3 + $0x740] sm:$0xff]
    %v283 = vld [vmem:[#allocation3 + $0x748] sm:$0xff]
    %v284 = vld [vmem:[#allocation3 + $0x750] sm:$0xff]
    %v285 = vld [vmem:[#allocation3 + $0x758] sm:$0xff]
    %v286 = vld [vmem:[#allocation3 + $0x760] sm:$0xff]
    %v287 = vld [vmem:[#allocation3 + $0x768] sm:$0xff]
    %v288 = vld [vmem:[#allocation3 + $0x770] sm:$0xff]
    %v289 = vld [vmem:[#allocation3 + $0x778] sm:$0xff]
    %v290 = vld [vmem:[#allocation3 + $0x780] sm:$0xff]
    %v291 = vld [vmem:[#allocation3 + $0x788] sm:$0xff]
    %v292 = vld [vmem:[#allocation3 + $0x790] sm:$0xff]
    %v293 = vld [vmem:[#allocation3 + $0x798] sm:$0xff]
    %v294 = vld [vmem:[#allocation3 + $0x7a0] sm:$0xff]
    %v295 = vld [vmem:[#allocation3 + $0x7a8] sm:$0xff]
    %v296 = vld [vmem:[#allocation3 + $0x7b0] sm:$0xff]
    %v297 = vld [vmem:[#allocation3 + $0x7b8] sm:$0xff]
    %v298 = vld [vmem:[#allocation3 + $0x7c0] sm:$0xff]
    %v299 = vld [vmem:[#allocation3 + $0x7c8] sm:$0xff]
    %v300 = vld [vmem:[#allocation3 + $0x7d0] sm:$0xff]
    %v301 = vld [vmem:[#allocation3 + $0x7d8] sm:$0xff]
    %v302 = vld [vmem:[#allocation3 + $0x7e0] sm:$0xff]
    %v303 = vld [vmem:[#allocation3 + $0x7e8] sm:$0xff]
    %v304 = vld [vmem:[#allocation3 + $0x7f0] sm:$0xff]
    %v305 = vld [vmem:[#allocation3 + $0x7f8] sm:$0xff]
    %v306 = vld [vmem:[#allocation6] sm:$0xff]
    %v307 = vld [vmem:[#allocation6 + $0x8] sm:$0xff]
    %v308 = vld [vmem:[#allocation6 + $0x10] sm:$0xff]
    %v309 = vld [vmem:[#allocation6 + $0x18] sm:$0xff]
    %310 = vmatpush.xpose.msra.mxu0 %v80
    %311 = vmatpush.xpose.msra.mxu0 %v78
    %312 = vmatpush.xpose.msra.mxu0 %v76
    %313 = vmatpush.xpose.msra.mxu0 %v74
    %314 = vmatpush.xpose.msra.mxu0 %v72
    %315 = vmatpush.xpose.msra.mxu0 %v70
    %316 = vmatpush.xpose.msra.mxu0 %v68
    %317 = vmatpush.xpose.msra.mxu0 %v66
    %318 = vmatpush.xpose.msra.mxu0 %v64
    %319 = vmatpush.xpose.msra.mxu0 %v62
    %320 = vmatpush.xpose.msra.mxu0 %v60
    %321 = vmatpush.xpose.msra.mxu0 %v58
    %322 = vmatpush.xpose.msra.mxu0 %v56
    %323 = vmatpush.xpose.msra.mxu0 %v54
    %324 = vmatpush.xpose.msra.mxu0 %v52
    %325 = vmatpush.xpose.msra.mxu0 %v50
    %326 = vmatmul.f32.gmra.mxu0 %v306
    %v327 = vpop.f32.mrf.mxu0
    %v328 = vadd.f32 0.0, %v327
    %329 = vmatmul.f32.gmra.mxu0 %v308
    %v330 = vpop.f32.mrf.mxu0
    %v331 = vadd.f32 0.0, %v330
    %332 = vdwg.mxu0
    %333 = vmatpush.xpose.msra.mxu0 %v81
    %334 = vmatpush.xpose.msra.mxu0 %v79
    %335 = vmatpush.xpose.msra.mxu0 %v77
    %336 = vmatpush.xpose.msra.mxu0 %v75
    %337 = vmatpush.xpose.msra.mxu0 %v73
    %338 = vmatpush.xpose.msra.mxu0 %v71
    %339 = vmatpush.xpose.msra.mxu0 %v69
    %340 = vmatpush.xpose.msra.mxu0 %v67
    %341 = vmatpush.xpose.msra.mxu0 %v65
    %342 = vmatpush.xpose.msra.mxu0 %v63
    %343 = vmatpush.xpose.msra.mxu0 %v61
    %344 = vmatpush.xpose.msra.mxu0 %v59
    %345 = vmatpush.xpose.msra.mxu0 %v57
    %346 = vmatpush.xpose.msra.mxu0 %v55
    %347 = vmatpush.xpose.msra.mxu0 %v53
    %348 = vmatpush.xpose.msra.mxu0 %v51
    %349 = vmatmul.f32.gmra.mxu0 %v307
    %v350 = vpop.f32.mrf.mxu0
    %v351 = vadd.f32 %v328, %v350
    %352 = vmatmul.f32.gmra.mxu0 %v309
    %v353 = vpop.f32.mrf.mxu0
    %v354 = vadd.f32 %v331, %v353
    %355 = vdwg.mxu0
    %356 = vmatpush.xpose.msra.mxu0 %v112
    %357 = vmatpush.xpose.msra.mxu0 %v110
    %358 = vmatpush.xpose.msra.mxu0 %v108
    %359 = vmatpush.xpose.msra.mxu0 %v106
    %360 = vmatpush.xpose.msra.mxu0 %v104
    %361 = vmatpush.xpose.msra.mxu0 %v102
    %362 = vmatpush.xpose.msra.mxu0 %v100
    %363 = vmatpush.xpose.msra.mxu0 %v98
    %364 = vmatpush.xpose.msra.mxu0 %v96
    %365 = vmatpush.xpose.msra.mxu0 %v94
    %366 = vmatpush.xpose.msra.mxu0 %v92
    %367 = vmatpush.xpose.msra.mxu0 %v90
    %368 = vmatpush.xpose.msra.mxu0 %v88
    %369 = vmatpush.xpose.msra.mxu0 %v86
    %370 = vmatpush.xpose.msra.mxu0 %v84
    %371 = vmatpush.xpose.msra.mxu0 %v82
    %372 = vmatmul.f32.gmra.mxu0 %v306
    %v373 = vpop.f32.mrf.mxu0
    %v374 = vadd.f32 0.0, %v373
    %375 = vmatmul.f32.gmra.mxu0 %v308
    %v376 = vpop.f32.mrf.mxu0
    %v377 = vadd.f32 0.0, %v376
    %378 = vdwg.mxu0
    %379 = vmatpush.xpose.msra.mxu0 %v113
    %380 = vmatpush.xpose.msra.mxu0 %v111
    %381 = vmatpush.xpose.msra.mxu0 %v109
    %382 = vmatpush.xpose.msra.mxu0 %v107
    %383 = vmatpush.xpose.msra.mxu0 %v105
    %384 = vmatpush.xpose.msra.mxu0 %v103
    %385 = vmatpush.xpose.msra.mxu0 %v101
    %386 = vmatpush.xpose.msra.mxu0 %v99
    %387 = vmatpush.xpose.msra.mxu0 %v97
    %388 = vmatpush.xpose.msra.mxu0 %v95
    %389 = vmatpush.xpose.msra.mxu0 %v93
    %390 = vmatpush.xpose.msra.mxu0 %v91
    %391 = vmatpush.xpose.msra.mxu0 %v89
    %392 = vmatpush.xpose.msra.mxu0 %v87
    %393 = vmatpush.xpose.msra.mxu0 %v85
    %394 = vmatpush.xpose.msra.mxu0 %v83
    %395 = vmatmul.f32.gmra.mxu0 %v307
    %v396 = vpop.f32.mrf.mxu0
    %v397 = vadd.f32 %v374, %v396
    %398 = vmatmul.f32.gmra.mxu0 %v309
    %v399 = vpop.f32.mrf.mxu0
    %v400 = vadd.f32 %v377, %v399
    %401 = vdwg.mxu0
    %402 = vmatpush.xpose.msra.mxu0 %v144
    %403 = vmatpush.xpose.msra.mxu0 %v142
    %404 = vmatpush.xpose.msra.mxu0 %v140
    %405 = vmatpush.xpose.msra.mxu0 %v138
    %406 = vmatpush.xpose.msra.mxu0 %v136
    %407 = vmatpush.xpose.msra.mxu0 %v134
    %408 = vmatpush.xpose.msra.mxu0 %v132
    %409 = vmatpush.xpose.msra.mxu0 %v130
    %410 = vmatpush.xpose.msra.mxu0 %v128
    %411 = vmatpush.xpose.msra.mxu0 %v126
    %412 = vmatpush.xpose.msra.mxu0 %v124
    %413 = vmatpush.xpose.msra.mxu0 %v122
    %414 = vmatpush.xpose.msra.mxu0 %v120
    %415 = vmatpush.xpose.msra.mxu0 %v118
    %416 = vmatpush.xpose.msra.mxu0 %v116
    %417 = vmatpush.xpose.msra.mxu0 %v114
    %418 = vmatmul.f32.gmra.mxu0 %v306
    %v419 = vpop.f32.mrf.mxu0
    %v420 = vadd.f32 0.0, %v419
    %421 = vmatmul.f32.gmra.mxu0 %v308
    %v422 = vpop.f32.mrf.mxu0
    %v423 = vadd.f32 0.0, %v422
    %424 = vdwg.mxu0
    %425 = vmatpush.xpose.msra.mxu0 %v145
    %426 = vmatpush.xpose.msra.mxu0 %v143
    %427 = vmatpush.xpose.msra.mxu0 %v141
    %428 = vmatpush.xpose.msra.mxu0 %v139
    %429 = vmatpush.xpose.msra.mxu0 %v137
    %430 = vmatpush.xpose.msra.mxu0 %v135
    %431 = vmatpush.xpose.msra.mxu0 %v133
    %432 = vmatpush.xpose.msra.mxu0 %v131
    %433 = vmatpush.xpose.msra.mxu0 %v129
    %434 = vmatpush.xpose.msra.mxu0 %v127
    %435 = vmatpush.xpose.msra.mxu0 %v125
    %436 = vmatpush.xpose.msra.mxu0 %v123
    %437 = vmatpush.xpose.msra.mxu0 %v121
    %438 = vmatpush.xpose.msra.mxu0 %v119
    %439 = vmatpush.xpose.msra.mxu0 %v117
    %440 = vmatpush.xpose.msra.mxu0 %v115
    %441 = vmatmul.f32.gmra.mxu0 %v307
    %v442 = vpop.f32.mrf.mxu0
    %v443 = vadd.f32 %v420, %v442
    %444 = vmatmul.f32.gmra.mxu0 %v309
    %v445 = vpop.f32.mrf.mxu0
    %v446 = vadd.f32 %v423, %v445
    %447 = vdwg.mxu0
    %448 = vmatpush.xpose.msra.mxu0 %v176
    %449 = vmatpush.xpose.msra.mxu0 %v174
    %450 = vmatpush.xpose.msra.mxu0 %v172
    %451 = vmatpush.xpose.msra.mxu0 %v170
    %452 = vmatpush.xpose.msra.mxu0 %v168
    %453 = vmatpush.xpose.msra.mxu0 %v166
    %454 = vmatpush.xpose.msra.mxu0 %v164
    %455 = vmatpush.xpose.msra.mxu0 %v162
    %456 = vmatpush.xpose.msra.mxu0 %v160
    %457 = vmatpush.xpose.msra.mxu0 %v158
    %458 = vmatpush.xpose.msra.mxu0 %v156
    %459 = vmatpush.xpose.msra.mxu0 %v154
    %460 = vmatpush.xpose.msra.mxu0 %v152
    %461 = vmatpush.xpose.msra.mxu0 %v150
    %462 = vmatpush.xpose.msra.mxu0 %v148
    %463 = vmatpush.xpose.msra.mxu0 %v146
    %464 = vmatmul.f32.gmra.mxu0 %v306
    %v465 = vpop.f32.mrf.mxu0
    %v466 = vadd.f32 0.0, %v465
    %467 = vmatmul.f32.gmra.mxu0 %v308
    %v468 = vpop.f32.mrf.mxu0
    %v469 = vadd.f32 0.0, %v468
    %470 = vdwg.mxu0
    %471 = vmatpush.xpose.msra.mxu0 %v177
    %472 = vmatpush.xpose.msra.mxu0 %v175
    %473 = vmatpush.xpose.msra.mxu0 %v173
    %474 = vmatpush.xpose.msra.mxu0 %v171
    %475 = vmatpush.xpose.msra.mxu0 %v169
    %476 = vmatpush.xpose.msra.mxu0 %v167
    %477 = vmatpush.xpose.msra.mxu0 %v165
    %478 = vmatpush.xpose.msra.mxu0 %v163
    %479 = vmatpush.xpose.msra.mxu0 %v161
    %480 = vmatpush.xpose.msra.mxu0 %v159
    %481 = vmatpush.xpose.msra.mxu0 %v157
    %482 = vmatpush.xpose.msra.mxu0 %v155
    %483 = vmatpush.xpose.msra.mxu0 %v153
    %484 = vmatpush.xpose.msra.mxu0 %v151
    %485 = vmatpush.xpose.msra.mxu0 %v149
    %486 = vmatpush.xpose.msra.mxu0 %v147
    %487 = vmatmul.f32.gmra.mxu0 %v307
    %v488 = vpop.f32.mrf.mxu0
    %v489 = vadd.f32 %v466, %v488
    %490 = vmatmul.f32.gmra.mxu0 %v309
    %v491 = vpop.f32.mrf.mxu0
    %v492 = vadd.f32 %v469, %v491
    %493 = vdwg.mxu0
    %494 = vmatpush.xpose.msra.mxu0 %v208
    %495 = vmatpush.xpose.msra.mxu0 %v206
    %496 = vmatpush.xpose.msra.mxu0 %v204
    %497 = vmatpush.xpose.msra.mxu0 %v202
    %498 = vmatpush.xpose.msra.mxu0 %v200
    %499 = vmatpush.xpose.msra.mxu0 %v198
    %500 = vmatpush.xpose.msra.mxu0 %v196
    %501 = vmatpush.xpose.msra.mxu0 %v194
    %502 = vmatpush.xpose.msra.mxu0 %v192
    %503 = vmatpush.xpose.msra.mxu0 %v190
    %504 = vmatpush.xpose.msra.mxu0 %v188
    %505 = vmatpush.xpose.msra.mxu0 %v186
    %506 = vmatpush.xpose.msra.mxu0 %v184
    %507 = vmatpush.xpose.msra.mxu0 %v182
    %508 = vmatpush.xpose.msra.mxu0 %v180
    %509 = vmatpush.xpose.msra.mxu0 %v178
    %510 = vmatmul.f32.gmra.mxu0 %v306
    %v511 = vpop.f32.mrf.mxu0
    %v512 = vadd.f32 0.0, %v511
    %513 = vmatmul.f32.gmra.mxu0 %v308
    %v514 = vpop.f32.mrf.mxu0
    %v515 = vadd.f32 0.0, %v514
    %516 = vdwg.mxu0
    %517 = vmatpush.xpose.msra.mxu0 %v209
    %518 = vmatpush.xpose.msra.mxu0 %v207
    %519 = vmatpush.xpose.msra.mxu0 %v205
    %520 = vmatpush.xpose.msra.mxu0 %v203
    %521 = vmatpush.xpose.msra.mxu0 %v201
    %522 = vmatpush.xpose.msra.mxu0 %v199
    %523 = vmatpush.xpose.msra.mxu0 %v197
    %524 = vmatpush.xpose.msra.mxu0 %v195
    %525 = vmatpush.xpose.msra.mxu0 %v193
    %526 = vmatpush.xpose.msra.mxu0 %v191
    %527 = vmatpush.xpose.msra.mxu0 %v189
    %528 = vmatpush.xpose.msra.mxu0 %v187
    %529 = vmatpush.xpose.msra.mxu0 %v185
    %530 = vmatpush.xpose.msra.mxu0 %v183
    %531 = vmatpush.xpose.msra.mxu0 %v181
    %532 = vmatpush.xpose.msra.mxu0 %v179
    %533 = vmatmul.f32.gmra.mxu0 %v307
    %v534 = vpop.f32.mrf.mxu0
    %v535 = vadd.f32 %v512, %v534
    %536 = vmatmul.f32.gmra.mxu0 %v309
    %v537 = vpop.f32.mrf.mxu0
    %v538 = vadd.f32 %v515, %v537
    %539 = vdwg.mxu0
    %540 = vmatpush.xpose.msra.mxu0 %v240
    %541 = vmatpush.xpose.msra.mxu0 %v238
    %542 = vmatpush.xpose.msra.mxu0 %v236
    %543 = vmatpush.xpose.msra.mxu0 %v234
    %544 = vmatpush.xpose.msra.mxu0 %v232
    %545 = vmatpush.xpose.msra.mxu0 %v230
    %546 = vmatpush.xpose.msra.mxu0 %v228
    %547 = vmatpush.xpose.msra.mxu0 %v226
    %548 = vmatpush.xpose.msra.mxu0 %v224
    %549 = vmatpush.xpose.msra.mxu0 %v222
    %550 = vmatpush.xpose.msra.mxu0 %v220
    %551 = vmatpush.xpose.msra.mxu0 %v218
    %552 = vmatpush.xpose.msra.mxu0 %v216
    %553 = vmatpush.xpose.msra.mxu0 %v214
    %554 = vmatpush.xpose.msra.mxu0 %v212
    %555 = vmatpush.xpose.msra.mxu0 %v210
    %556 = vmatmul.f32.gmra.mxu0 %v306
    %v557 = vpop.f32.mrf.mxu0
    %v558 = vadd.f32 0.0, %v557
    %559 = vmatmul.f32.gmra.mxu0 %v308
    %v560 = vpop.f32.mrf.mxu0
    %v561 = vadd.f32 0.0, %v560
    %562 = vdwg.mxu0
    %563 = vmatpush.xpose.msra.mxu0 %v241
    %564 = vmatpush.xpose.msra.mxu0 %v239
    %565 = vmatpush.xpose.msra.mxu0 %v237
    %566 = vmatpush.xpose.msra.mxu0 %v235
    %567 = vmatpush.xpose.msra.mxu0 %v233
    %568 = vmatpush.xpose.msra.mxu0 %v231
    %569 = vmatpush.xpose.msra.mxu0 %v229
    %570 = vmatpush.xpose.msra.mxu0 %v227
    %571 = vmatpush.xpose.msra.mxu0 %v225
    %572 = vmatpush.xpose.msra.mxu0 %v223
    %573 = vmatpush.xpose.msra.mxu0 %v221
    %574 = vmatpush.xpose.msra.mxu0 %v219
    %575 = vmatpush.xpose.msra.mxu0 %v217
    %576 = vmatpush.xpose.msra.mxu0 %v215
    %577 = vmatpush.xpose.msra.mxu0 %v213
    %578 = vmatpush.xpose.msra.mxu0 %v211
    %579 = vmatmul.f32.gmra.mxu0 %v307
    %v580 = vpop.f32.mrf.mxu0
    %v581 = vadd.f32 %v558, %v580
    %582 = vmatmul.f32.gmra.mxu0 %v309
    %v583 = vpop.f32.mrf.mxu0
    %v584 = vadd.f32 %v561, %v583
    %585 = vdwg.mxu0
    %586 = vmatpush.xpose.msra.mxu0 %v272
    %587 = vmatpush.xpose.msra.mxu0 %v270
    %588 = vmatpush.xpose.msra.mxu0 %v268
    %589 = vmatpush.xpose.msra.mxu0 %v266
    %590 = vmatpush.xpose.msra.mxu0 %v264
    %591 = vmatpush.xpose.msra.mxu0 %v262
    %592 = vmatpush.xpose.msra.mxu0 %v260
    %593 = vmatpush.xpose.msra.mxu0 %v258
    %594 = vmatpush.xpose.msra.mxu0 %v256
    %595 = vmatpush.xpose.msra.mxu0 %v254
    %596 = vmatpush.xpose.msra.mxu0 %v252
    %597 = vmatpush.xpose.msra.mxu0 %v250
    %598 = vmatpush.xpose.msra.mxu0 %v248
    %599 = vmatpush.xpose.msra.mxu0 %v246
    %600 = vmatpush.xpose.msra.mxu0 %v244
    %601 = vmatpush.xpose.msra.mxu0 %v242
    %602 = vmatmul.f32.gmra.mxu0 %v306
    %v603 = vpop.f32.mrf.mxu0
    %v604 = vadd.f32 0.0, %v603
    %605 = vmatmul.f32.gmra.mxu0 %v308
    %v606 = vpop.f32.mrf.mxu0
    %v607 = vadd.f32 0.0, %v606
    %608 = vdwg.mxu0
    %609 = vmatpush.xpose.msra.mxu0 %v273
    %610 = vmatpush.xpose.msra.mxu0 %v271
    %611 = vmatpush.xpose.msra.mxu0 %v269
    %612 = vmatpush.xpose.msra.mxu0 %v267
    %613 = vmatpush.xpose.msra.mxu0 %v265
    %614 = vmatpush.xpose.msra.mxu0 %v263
    %615 = vmatpush.xpose.msra.mxu0 %v261
    %616 = vmatpush.xpose.msra.mxu0 %v259
    %617 = vmatpush.xpose.msra.mxu0 %v257
    %618 = vmatpush.xpose.msra.mxu0 %v255
    %619 = vmatpush.xpose.msra.mxu0 %v253
    %620 = vmatpush.xpose.msra.mxu0 %v251
    %621 = vmatpush.xpose.msra.mxu0 %v249
    %622 = vmatpush.xpose.msra.mxu0 %v247
    %623 = vmatpush.xpose.msra.mxu0 %v245
    %624 = vmatpush.xpose.msra.mxu0 %v243
    %625 = vmatmul.f32.gmra.mxu0 %v307
    %v626 = vpop.f32.mrf.mxu0
    %v627 = vadd.f32 %v604, %v626
    %628 = vmatmul.f32.gmra.mxu0 %v309
    %v629 = vpop.f32.mrf.mxu0
    %v630 = vadd.f32 %v607, %v629
    %631 = vdwg.mxu0
    %632 = vmatpush.xpose.msra.mxu0 %v304
    %633 = vmatpush.xpose.msra.mxu0 %v302
    %634 = vmatpush.xpose.msra.mxu0 %v300
    %635 = vmatpush.xpose.msra.mxu0 %v298
    %636 = vmatpush.xpose.msra.mxu0 %v296
    %637 = vmatpush.xpose.msra.mxu0 %v294
    %638 = vmatpush.xpose.msra.mxu0 %v292
    %639 = vmatpush.xpose.msra.mxu0 %v290
    %640 = vmatpush.xpose.msra.mxu0 %v288
    %641 = vmatpush.xpose.msra.mxu0 %v286
    %642 = vmatpush.xpose.msra.mxu0 %v284
    %643 = vmatpush.xpose.msra.mxu0 %v282
    %644 = vmatpush.xpose.msra.mxu0 %v280
    %645 = vmatpush.xpose.msra.mxu0 %v278
    %646 = vmatpush.xpose.msra.mxu0 %v276
    %647 = vmatpush.xpose.msra.mxu0 %v274
    %648 = vmatmul.f32.gmra.mxu0 %v306
    %v649 = vpop.f32.mrf.mxu0
    %v650 = vadd.f32 0.0, %v649
    %651 = vmatmul.f32.gmra.mxu0 %v308
    %v652 = vpop.f32.mrf.mxu0
    %v653 = vadd.f32 0.0, %v652
    %654 = vdwg.mxu0
    %655 = vmatpush.xpose.msra.mxu0 %v305
    %656 = vmatpush.xpose.msra.mxu0 %v303
    %657 = vmatpush.xpose.msra.mxu0 %v301
    %658 = vmatpush.xpose.msra.mxu0 %v299
    %659 = vmatpush.xpose.msra.mxu0 %v297
    %660 = vmatpush.xpose.msra.mxu0 %v295
    %661 = vmatpush.xpose.msra.mxu0 %v293
    %662 = vmatpush.xpose.msra.mxu0 %v291
    %663 = vmatpush.xpose.msra.mxu0 %v289
    %664 = vmatpush.xpose.msra.mxu0 %v287
    %665 = vmatpush.xpose.msra.mxu0 %v285
    %666 = vmatpush.xpose.msra.mxu0 %v283
    %667 = vmatpush.xpose.msra.mxu0 %v281
    %668 = vmatpush.xpose.msra.mxu0 %v279
    %669 = vmatpush.xpose.msra.mxu0 %v277
    %670 = vmatpush.xpose.msra.mxu0 %v275
    %671 = vmatmul.f32.gmra.mxu0 %v307
    %v672 = vpop.f32.mrf.mxu0
    %v673 = vadd.f32 %v650, %v672
    %674 = vmatmul.f32.gmra.mxu0 %v309
    %v675 = vpop.f32.mrf.mxu0
    %v676 = vadd.f32 %v653, %v675
    %677 = vdwg.mxu0
    %v678 = vld [vmem:[#allocation2] sm:$0xff]
    %v679 = vld [vmem:[#allocation2 + $0x8] sm:$0xff]
    %v680 = vmul.f32 %v678, 0.2
    %v681 = vmul.f32 %v679, 0.2
    %v682 = vadd.f32 %v680, %v351
    %v683 = vadd.f32 %v681, %v354
    %vm684 = vcmp.ge.f32.partialorder %v682, 0.5
    %vm685 = vcmp.ge.f32.partialorder %v683, 0.5
    %v686 = vsel %vm684, 1, 0
    %v687 = vsel %vm685, 1, 0
    %v688 = vcvt.s32.f32 %v686
    %v689 = vcvt.s32.f32 %v687
    %690 = vst [vmem:[#allocation8] sm:$0xff] %v688
    %691 = vst [vmem:[#allocation8 + $0x8] sm:$0xff] %v689
    %v692 = vsel %vm684, 0.0, %v682
    %v693 = vsel %vm685, 0.0, %v683
    %694 = vst [vmem:[#allocation2] sm:$0xff] %v692
    %695 = vst [vmem:[#allocation2 + $0x8] sm:$0xff] %v693
    %v696 = vld [vmem:[#allocation2] sm:$0xff]
    %v697 = vld [vmem:[#allocation2 + $0x8] sm:$0xff]
    %v698 = vmul.f32 %v696, 0.2
    %v699 = vmul.f32 %v697, 0.2
    %v700 = vadd.f32 %v698, %v397
    %v701 = vadd.f32 %v699, %v400
    %vm702 = vcmp.ge.f32.partialorder %v700, 0.5
    %vm703 = vcmp.ge.f32.partialorder %v701, 0.5
    %v704 = vsel %vm702, 1, 0
    %v705 = vsel %vm703, 1, 0
    %v706 = vcvt.s32.f32 %v704
    %v707 = vcvt.s32.f32 %v705
    %s708 = scalar_lea.vmem [#allocation8], 16
    %709 = vst [vmem:[%s708] sm:$0xff] %v706
    %710 = vst [vmem:[%s708 + $0x8] sm:$0xff] %v707
    %v711 = vsel %vm702, 0.0, %v700
    %v712 = vsel %vm703, 0.0, %v701
    %713 = vst [vmem:[#allocation2] sm:$0xff] %v711
    %714 = vst [vmem:[#allocation2 + $0x8] sm:$0xff] %v712
    %v715 = vld [vmem:[#allocation2] sm:$0xff]
    %v716 = vld [vmem:[#allocation2 + $0x8] sm:$0xff]
    %v717 = vmul.f32 %v715, 0.2
    %v718 = vmul.f32 %v716, 0.2
    %v719 = vadd.f32 %v717, %v443
    %v720 = vadd.f32 %v718, %v446
    %vm721 = vcmp.ge.f32.partialorder %v719, 0.5
    %vm722 = vcmp.ge.f32.partialorder %v720, 0.5
    %v723 = vsel %vm721, 1, 0
    %v724 = vsel %vm722, 1, 0
    %v725 = vcvt.s32.f32 %v723
    %v726 = vcvt.s32.f32 %v724
    %s727 = scalar_lea.vmem [#allocation8], 32
    %728 = vst [vmem:[%s727] sm:$0xff] %v725
    %729 = vst [vmem:[%s727 + $0x8] sm:$0xff] %v726
    %v730 = vsel %vm721, 0.0, %v719
    %v731 = vsel %vm722, 0.0, %v720
    %732 = vst [vmem:[#allocation2] sm:$0xff] %v730
    %733 = vst [vmem:[#allocation2 + $0x8] sm:$0xff] %v731
    %v734 = vld [vmem:[#allocation2] sm:$0xff]
    %v735 = vld [vmem:[#allocation2 + $0x8] sm:$0xff]
    %v736 = vmul.f32 %v734, 0.2
    %v737 = vmul.f32 %v735, 0.2
    %v738 = vadd.f32 %v736, %v489
    %v739 = vadd.f32 %v737, %v492
    %vm740 = vcmp.ge.f32.partialorder %v738, 0.5
    %vm741 = vcmp.ge.f32.partialorder %v739, 0.5
    %v742 = vsel %vm740, 1, 0
    %v743 = vsel %vm741, 1, 0
    %v744 = vcvt.s32.f32 %v742
    %v745 = vcvt.s32.f32 %v743
    %s746 = scalar_lea.vmem [#allocation8], 48
    %747 = vst [vmem:[%s746] sm:$0xff] %v744
    %748 = vst [vmem:[%s746 + $0x8] sm:$0xff] %v745
    %v749 = vsel %vm740, 0.0, %v738
    %v750 = vsel %vm741, 0.0, %v739
    %751 = vst [vmem:[#allocation2] sm:$0xff] %v749
    %752 = vst [vmem:[#allocation2 + $0x8] sm:$0xff] %v750
    %v753 = vld [vmem:[#allocation2] sm:$0xff]
    %v754 = vld [vmem:[#allocation2 + $0x8] sm:$0xff]
    %v755 = vmul.f32 %v753, 0.2
    %v756 = vmul.f32 %v754, 0.2
    %v757 = vadd.f32 %v755, %v535
    %v758 = vadd.f32 %v756, %v538
    %vm759 = vcmp.ge.f32.partialorder %v757, 0.5
    %vm760 = vcmp.ge.f32.partialorder %v758, 0.5
    %v761 = vsel %vm759, 1, 0
    %v762 = vsel %vm760, 1, 0
    %v763 = vcvt.s32.f32 %v761
    %v764 = vcvt.s32.f32 %v762
    %s765 = scalar_lea.vmem [#allocation8], 64
    %766 = vst [vmem:[%s765] sm:$0xff] %v763
    %767 = vst [vmem:[%s765 + $0x8] sm:$0xff] %v764
    %v768 = vsel %vm759, 0.0, %v757
    %v769 = vsel %vm760, 0.0, %v758
    %770 = vst [vmem:[#allocation2] sm:$0xff] %v768
    %771 = vst [vmem:[#allocation2 + $0x8] sm:$0xff] %v769
    %v772 = vld [vmem:[#allocation2] sm:$0xff]
    %v773 = vld [vmem:[#allocation2 + $0x8] sm:$0xff]
    %v774 = vmul.f32 %v772, 0.2
    %v775 = vmul.f32 %v773, 0.2
    %v776 = vadd.f32 %v774, %v581
    %v777 = vadd.f32 %v775, %v584
    %vm778 = vcmp.ge.f32.partialorder %v776, 0.5
    %vm779 = vcmp.ge.f32.partialorder %v777, 0.5
    %v780 = vsel %vm778, 1, 0
    %v781 = vsel %vm779, 1, 0
    %v782 = vcvt.s32.f32 %v780
    %v783 = vcvt.s32.f32 %v781
    %s784 = scalar_lea.vmem [#allocation8], 80
    %785 = vst [vmem:[%s784] sm:$0xff] %v782
    %786 = vst [vmem:[%s784 + $0x8] sm:$0xff] %v783
    %v787 = vsel %vm778, 0.0, %v776
    %v788 = vsel %vm779, 0.0, %v777
    %789 = vst [vmem:[#allocation2] sm:$0xff] %v787
    %790 = vst [vmem:[#allocation2 + $0x8] sm:$0xff] %v788
    %v791 = vld [vmem:[#allocation2] sm:$0xff]
    %v792 = vld [vmem:[#allocation2 + $0x8] sm:$0xff]
    %v793 = vmul.f32 %v791, 0.2
    %v794 = vmul.f32 %v792, 0.2
    %v795 = vadd.f32 %v793, %v627
    %v796 = vadd.f32 %v794, %v630
    %vm797 = vcmp.ge.f32.partialorder %v795, 0.5
    %vm798 = vcmp.ge.f32.partialorder %v796, 0.5
    %v799 = vsel %vm797, 1, 0
    %v800 = vsel %vm798, 1, 0
    %v801 = vcvt.s32.f32 %v799
    %v802 = vcvt.s32.f32 %v800
    %s803 = scalar_lea.vmem [#allocation8], 96
    %804 = vst [vmem:[%s803] sm:$0xff] %v801
    %805 = vst [vmem:[%s803 + $0x8] sm:$0xff] %v802
    %v806 = vsel %vm797, 0.0, %v795
    %v807 = vsel %vm798, 0.0, %v796
    %808 = vst [vmem:[#allocation2] sm:$0xff] %v806
    %809 = vst [vmem:[#allocation2 + $0x8] sm:$0xff] %v807
    %v810 = vld [vmem:[#allocation2] sm:$0xff]
    %v811 = vld [vmem:[#allocation2 + $0x8] sm:$0xff]
    %v812 = vmul.f32 %v810, 0.2
    %v813 = vmul.f32 %v811, 0.2
    %v814 = vadd.f32 %v812, %v673
    %v815 = vadd.f32 %v813, %v676
    %vm816 = vcmp.ge.f32.partialorder %v814, 0.5
    %vm817 = vcmp.ge.f32.partialorder %v815, 0.5
    %v818 = vsel %vm816, 1, 0
    %v819 = vsel %vm817, 1, 0
    %v820 = vcvt.s32.f32 %v818
    %v821 = vcvt.s32.f32 %v819
    %s822 = scalar_lea.vmem [#allocation8], 112
    %823 = vst [vmem:[%s822] sm:$0xff] %v820
    %824 = vst [vmem:[%s822 + $0x8] sm:$0xff] %v821
    %v825 = vsel %vm816, 0.0, %v814
    %v826 = vsel %vm817, 0.0, %v815
    %827 = vst [vmem:[#allocation2] sm:$0xff] %v825
    %828 = vst [vmem:[#allocation2 + $0x8] sm:$0xff] %v826
    // Predicated region
    $region22: #{tpu_custom_call.1} parent=1 // pred_check
      _
    $region23: #{tpu_custom_call.1} parent=1 // pred_check_branch
      %830 = sbr.rel (0) target = $region25
    $region24: #{tpu_custom_call.1} parent=1 // pred_region
      %832 = vsyncadd [#allocation5], 0
      %s833 = sshll.u32 [#allocation8], 4
      %s834 = int_to_ptr.vmem [resolvable:$true] %s833
      %s835 = sshll.u32 %s2, 4
      %s836 = int_to_ptr.hbm [resolvable:$true] %s835
      %841 = dma.vmem_to_hbm [thread:$0]  %s834, 2048, %s836, [#allocation5], 128, 128, 8
    $region25: #{tpu_custom_call.1} parent=1 // pred_fallthru
      _
    // Predicated region
    $region26: #{tpu_custom_call.1} parent=1 // pred_check
      _
    $region27: #{tpu_custom_call.1} parent=1 // pred_check_branch
      %843 = sbr.rel (0) target = $region29
    $region28: #{tpu_custom_call.1} parent=1 // pred_region
      %845 = dma.done [#allocation5], 2048
    $region29: #{tpu_custom_call.1} parent=1 // pred_fallthru
      _
    %846 = vsyncpa [#allocation4], 1
    %847 = vsyncpa [#allocation7], 1
    %848 = vsyncpa [#allocation5], 1

</llo_original>
